<compile_context>
chip_gen: v5e
topology: v5e:2x2
jax: 0.10.0
libtpu: 0.0.40
codegen_flags: <defaults>
</compile_context>

<pallas_src>
import math

import jax
import jax.numpy as jnp
from jax import lax
from jax.experimental import pallas as pl
from jax.experimental.pallas import tpu as pltpu


def prepare_params(params, input_dim, d_pad):
    """One-time host-side prep: transpose to [in,out], fuse QKV, fold scale, pad."""
    pad = d_pad - input_dim
    scale = 1.0 / math.sqrt(float(input_dim))

    def pad_w(w_t):  # w_t: [in, out]
        return jnp.pad(w_t, ((0, pad), (0, pad)))

    def pad_b(b):
        return jnp.pad(b, (0, pad)).reshape(1, d_pad)

    wqkv = jnp.concatenate(
        [
            pad_w((params["wq"] * scale).T),   # scale folded into Wq
            pad_w(params["wk"].T),
            pad_w(params["wv"].T),
        ],
        axis=1,
    )  # [d_pad, 3*d_pad]
    bqkv = jnp.concatenate(
        [pad_b(params["bq"] * scale), pad_b(params["bk"]), pad_b(params["bv"])],
        axis=1,
    )  # [1, 3*d_pad]
    return {
        "wqkv": wqkv,
        "bqkv": bqkv,
        "w1": pad_w(params["w1"].T),
        "b1": pad_b(params["b1"]),
        "w2": pad_w(params["w2"].T),
        "b2": pad_b(params["b2"]),
    }


def transformer_encoder(x, prepped, *, row_tile=8):
    """x: [S, D] float32; prepped: output of prepare_params (padded, [in,out])."""
    S, D = x.shape
    Dp = prepped["w1"].shape[0]               # padded feature dim (multiple of 128)
    Sp = ((S + 7) // 8) * 8                   # sublane-aligned sequence length
    TM = row_tile if (Sp % row_tile == 0) else Sp
    num_tiles = Sp // TM

    x_p = jnp.pad(x, ((0, Sp - S), (0, Dp - D)))

    def kernel(xr_ref, xf_ref, wqkv_ref, bqkv_ref, w1_ref, b1_ref, w2_ref, b2_ref, o_ref):
        x_rows = xr_ref[...]                  # [TM, Dp] rows owned by this grid step
        x_full = xf_ref[...]                  # [Sp, Dp] whole sequence (for K/V)

        # Q for this row tile; 1/sqrt(D) already folded into Wq/bq at prep time.
        q = jnp.dot(x_rows, wqkv_ref[:, :Dp],
                    preferred_element_type=jnp.float32) + bqkv_ref[:, :Dp]

        # K and V for the whole sequence in one fused [Dp, 2*Dp] matmul.
        # TODO(synk): at large S this should be streamed flash-style instead of
        # recomputed per row tile and materializing the [TM, Sp] score matrix.
        kv = jnp.dot(x_full, wqkv_ref[:, Dp:],
                     preferred_element_type=jnp.float32) + bqkv_ref[:, Dp:]
        if Sp != S:  # mask K/V rows that come from sequence padding (bias leaks)
            row_ok = lax.broadcasted_iota(jnp.int32, (Sp, 1), 0) < S
            kv = jnp.where(row_ok, kv, 0.0)
        k = kv[:, :Dp]
        v = kv[:, Dp:]

        # Scores: contract the feature axes directly (no materialized K^T).
        attn = lax.dot_general(q, k, (((1,), (1,)), ((), ())),
                               preferred_element_type=jnp.float32)   # [TM, Sp]
        # TODO(synk): nn.Dropout is identity in eval mode; no stochastic masking.
        ctx = jnp.dot(attn, v, preferred_element_type=jnp.float32)   # [TM, Dp]

        # FeedForward (weights already [in, out]; no transposes).
        h = jnp.dot(ctx, w1_ref[...], preferred_element_type=jnp.float32) + b1_ref[...]
        y = jnp.dot(h, w2_ref[...], preferred_element_type=jnp.float32) + b2_ref[...]
        o_ref[...] = y.astype(o_ref.dtype)

    out_p = pl.pallas_call(
        kernel,
        out_shape=jax.ShapeDtypeStruct((Sp, Dp), x.dtype),
        grid=(num_tiles,),
        in_specs=[
            pl.BlockSpec((TM, Dp), lambda i: (i, 0)),        # x row tile (Q rows)
            pl.BlockSpec((Sp, Dp), lambda i: (0, 0)),        # x full (K/V)
            pl.BlockSpec((Dp, 3 * Dp), lambda i: (0, 0)),    # fused Wqkv [in, 3*out]
            pl.BlockSpec((1, 3 * Dp), lambda i: (0, 0)),     # fused bqkv
            pl.BlockSpec((Dp, Dp), lambda i: (0, 0)),        # W1 [in, out]
            pl.BlockSpec((1, Dp), lambda i: (0, 0)),         # b1
            pl.BlockSpec((Dp, Dp), lambda i: (0, 0)),        # W2 [in, out]
            pl.BlockSpec((1, Dp), lambda i: (0, 0)),         # b2
        ],
        out_specs=pl.BlockSpec((TM, Dp), lambda i: (i, 0)),  # lane-dense output
        compiler_params=pltpu.CompilerParams(
            dimension_semantics=("parallel",),               # v7x megacore sharding
            vmem_limit_bytes=32 * 1024 * 1024,
        ),
    )(
        x_p, x_p,
        prepped["wqkv"], prepped["bqkv"],
        prepped["w1"], prepped["b1"],
        prepped["w2"], prepped["b2"],
    )
    return out_p[:S, :D]


def init_params(key, input_dim):
    """Deterministic PyTorch-Linear-style init: U(-1/sqrt(in), 1/sqrt(in))."""
    bound = 1.0 / math.sqrt(input_dim)
    names = ["wq", "bq", "wk", "bk", "wv", "bv", "w1", "b1", "w2", "b2"]
    keys = jax.random.split(key, len(names))
    params = {}
    for name, k in zip(names, keys):
        shape = (input_dim, input_dim) if name.startswith("w") else (input_dim,)
        params[name] = jax.random.uniform(
            k, shape, dtype=jnp.float32, minval=-bound, maxval=bound
        )
    return params


def reference(x, params):
    """Pure-JAX reference matching the PyTorch forward (eval mode)."""
    D = x.shape[-1]
    q = x @ params["wq"].T + params["bq"]
    k = x @ params["wk"].T + params["bk"]
    v = x @ params["wv"].T + params["bv"]
    attn = (q @ k.T) / math.sqrt(float(D))
    ctx = attn @ v
    h = ctx @ params["w1"].T + params["b1"]
    return h @ params["w2"].T + params["b2"]


if __name__ == "__main__":
    S, D = 16, 32                      # seq_len, input_dim (2 row tiles of 8)
    Dp = ((D + 127) // 128) * 128      # pad feature dim to full lane width

    key = jax.random.PRNGKey(0)
    kx, kp = jax.random.split(key)
    x = jax.random.normal(kx, (S, D), dtype=jnp.float32)
    params = init_params(kp, D)
    prepped = prepare_params(params, D, Dp)

    out = transformer_encoder(x, prepped)
    out = jax.block_until_ready(out)

    ref = reference(x, params)
    assert out.shape == (S, D)
    assert jnp.allclose(out, ref, atol=1e-4, rtol=1e-4), "mismatch vs reference"
    print("KERNEL_OK")
</pallas_src>

<mosaic_0001>
module attributes {stable_mosaic.version = 11 : i64} {
  func.func @kernel(%arg0: i32, %arg1: memref<8x128xf32, #tpu.memory_space<vmem>>, %arg2: memref<16x128xf32, #tpu.memory_space<vmem>>, %arg3: memref<128x384xf32, #tpu.memory_space<vmem>>, %arg4: memref<1x384xf32, #tpu.memory_space<vmem>>, %arg5: memref<128x128xf32, #tpu.memory_space<vmem>>, %arg6: memref<1x128xf32, #tpu.memory_space<vmem>>, %arg7: memref<128x128xf32, #tpu.memory_space<vmem>>, %arg8: memref<1x128xf32, #tpu.memory_space<vmem>>, %arg9: memref<8x128xf32, #tpu.memory_space<vmem>>) attributes {dimension_semantics = [#tpu.dimension_semantics<parallel>], iteration_bounds = array<i64: 2>, scalar_prefetch = 0 : i64, scratch_operands = 0 : i64, tpu.core_type = #tpu.core_type<tc>, window_params = [{transform_indices = @transform_0, window_bounds = array<i64: 8, 128>}, {pipeline_mode = #tpu.pipeline_mode<synchronous>, transform_indices = @transform_1, window_bounds = array<i64: 16, 128>}, {pipeline_mode = #tpu.pipeline_mode<synchronous>, transform_indices = @transform_2, window_bounds = array<i64: 128, 384>}, {pipeline_mode = #tpu.pipeline_mode<synchronous>, transform_indices = @transform_3, window_bounds = array<i64: 1, 384>}, {pipeline_mode = #tpu.pipeline_mode<synchronous>, transform_indices = @transform_4, window_bounds = array<i64: 128, 128>}, {pipeline_mode = #tpu.pipeline_mode<synchronous>, transform_indices = @transform_5, window_bounds = array<i64: 1, 128>}, {pipeline_mode = #tpu.pipeline_mode<synchronous>, transform_indices = @transform_6, window_bounds = array<i64: 128, 128>}, {pipeline_mode = #tpu.pipeline_mode<synchronous>, transform_indices = @transform_7, window_bounds = array<i64: 1, 128>}, {transform_indices = @transform_8, window_bounds = array<i64: 8, 128>}]} {
    %c0 = arith.constant 0 : index
    %c0_0 = arith.constant 0 : index
    %0 = vector.load %arg1[%c0, %c0_0] : memref<8x128xf32, #tpu.memory_space<vmem>>, vector<8x128xf32>
    %c0_1 = arith.constant 0 : index
    %c0_2 = arith.constant 0 : index
    %1 = vector.load %arg2[%c0_1, %c0_2] : memref<16x128xf32, #tpu.memory_space<vmem>>, vector<16x128xf32>
    %c0_3 = arith.constant 0 : index
    %c0_4 = arith.constant 0 : index
    %2 = vector.load %arg3[%c0_3, %c0_4] : memref<128x384xf32, #tpu.memory_space<vmem>>, vector<128x128xf32>
    %cst = arith.constant dense<0.000000e+00> : vector<8x128xf32>
    %3 = tpu.matmul %0, %2, %cst {dimension_numbers = #tpu.dot_dimension_numbers<[1], [0], [0], [1], [0, 0, 1, 1], [], []>} : vector<8x128xf32>, vector<128x128xf32>, vector<8x128xf32> -> vector<8x128xf32>
    %c0_5 = arith.constant 0 : index
    %c0_6 = arith.constant 0 : index
    %4 = vector.load %arg4[%c0_5, %c0_6] : memref<1x384xf32, #tpu.memory_space<vmem>>, vector<1x128xf32>
    %5 = vector.broadcast %4 : vector<1x128xf32> to vector<8x128xf32>
    %6 = arith.addf %3, %5 : vector<8x128xf32>
    %c0_7 = arith.constant 0 : index
    %c128 = arith.constant 128 : index
    %7 = vector.load %arg3[%c0_7, %c128] : memref<128x384xf32, #tpu.memory_space<vmem>>, vector<128x256xf32>
    %cst_8 = arith.constant dense<0.000000e+00> : vector<16x256xf32>
    %8 = tpu.matmul %1, %7, %cst_8 {dimension_numbers = #tpu.dot_dimension_numbers<[1], [0], [0], [1], [0, 0, 1, 1], [], []>} : vector<16x128xf32>, vector<128x256xf32>, vector<16x256xf32> -> vector<16x256xf32>
    %c0_9 = arith.constant 0 : index
    %c128_10 = arith.constant 128 : index
    %9 = vector.load %arg4[%c0_9, %c128_10] : memref<1x384xf32, #tpu.memory_space<vmem>>, vector<1x256xf32>
    %10 = vector.broadcast %9 : vector<1x256xf32> to vector<16x256xf32>
    %11 = arith.addf %8, %10 : vector<16x256xf32>
    %12 = vector.extract_strided_slice %11 {offsets = [0, 0], sizes = [16, 128], strides = [1, 1]} : vector<16x256xf32> to vector<16x128xf32>
    %13 = vector.extract_strided_slice %11 {offsets = [0, 128], sizes = [16, 128], strides = [1, 1]} : vector<16x256xf32> to vector<16x128xf32>
    %cst_11 = arith.constant dense<0.000000e+00> : vector<8x16xf32>
    %14 = tpu.matmul %6, %12, %cst_11 {dimension_numbers = #tpu.dot_dimension_numbers<[1], [1], [0], [0], [0, 0, 1, 0], [], []>} : vector<8x128xf32>, vector<16x128xf32>, vector<8x16xf32> -> vector<8x16xf32>
    %cst_12 = arith.constant dense<0.000000e+00> : vector<8x128xf32>
    %15 = tpu.matmul %14, %13, %cst_12 {dimension_numbers = #tpu.dot_dimension_numbers<[1], [0], [0], [1], [0, 0, 1, 1], [], []>} : vector<8x16xf32>, vector<16x128xf32>, vector<8x128xf32> -> vector<8x128xf32>
    %c0_13 = arith.constant 0 : index
    %c0_14 = arith.constant 0 : index
    %16 = vector.load %arg5[%c0_13, %c0_14] : memref<128x128xf32, #tpu.memory_space<vmem>>, vector<128x128xf32>
    %cst_15 = arith.constant dense<0.000000e+00> : vector<8x128xf32>
    %17 = tpu.matmul %15, %16, %cst_15 {dimension_numbers = #tpu.dot_dimension_numbers<[1], [0], [0], [1], [0, 0, 1, 1], [], []>} : vector<8x128xf32>, vector<128x128xf32>, vector<8x128xf32> -> vector<8x128xf32>
    %c0_16 = arith.constant 0 : index
    %c0_17 = arith.constant 0 : index
    %18 = vector.load %arg6[%c0_16, %c0_17] : memref<1x128xf32, #tpu.memory_space<vmem>>, vector<1x128xf32>
    %19 = vector.broadcast %18 : vector<1x128xf32> to vector<8x128xf32>
    %20 = arith.addf %17, %19 : vector<8x128xf32>
    %c0_18 = arith.constant 0 : index
    %c0_19 = arith.constant 0 : index
    %21 = vector.load %arg7[%c0_18, %c0_19] : memref<128x128xf32, #tpu.memory_space<vmem>>, vector<128x128xf32>
    %cst_20 = arith.constant dense<0.000000e+00> : vector<8x128xf32>
    %22 = tpu.matmul %20, %21, %cst_20 {dimension_numbers = #tpu.dot_dimension_numbers<[1], [0], [0], [1], [0, 0, 1, 1], [], []>} : vector<8x128xf32>, vector<128x128xf32>, vector<8x128xf32> -> vector<8x128xf32>
    %c0_21 = arith.constant 0 : index
    %c0_22 = arith.constant 0 : index
    %23 = vector.load %arg8[%c0_21, %c0_22] : memref<1x128xf32, #tpu.memory_space<vmem>>, vector<1x128xf32>
    %24 = vector.broadcast %23 : vector<1x128xf32> to vector<8x128xf32>
    %25 = arith.addf %22, %24 : vector<8x128xf32>
    %c0_23 = arith.constant 0 : index
    %c0_24 = arith.constant 0 : index
    %26 = vector.load %arg9[%c0_23, %c0_24] : memref<8x128xf32, #tpu.memory_space<vmem>>, vector<8x128xf32>
    tpu.vector_store %arg9[%c0_23, %c0_24], %25 {strides = array<i32>} : memref<8x128xf32, #tpu.memory_space<vmem>>, vector<8x128xf32>,
    return
  }
  func.func @transform_0(%arg0: i32) -> (i32, i32) {
    %c0_i32 = arith.constant 0 : i32
    %c0_i32_0 = arith.constant 0 : i32
    return %arg0, %c0_i32 : i32, i32
  }
  func.func @transform_1(%arg0: i32) -> (i32, i32) {
    %c0_i32 = arith.constant 0 : i32
    %c0_i32_0 = arith.constant 0 : i32
    %c0_i32_1 = arith.constant 0 : i32
    return %c0_i32, %c0_i32_0 : i32, i32
  }
  func.func @transform_2(%arg0: i32) -> (i32, i32) {
    %c0_i32 = arith.constant 0 : i32
    %c0_i32_0 = arith.constant 0 : i32
    %c0_i32_1 = arith.constant 0 : i32
    return %c0_i32, %c0_i32_0 : i32, i32
  }
  func.func @transform_3(%arg0: i32) -> (i32, i32) {
    %c0_i32 = arith.constant 0 : i32
    %c0_i32_0 = arith.constant 0 : i32
    %c0_i32_1 = arith.constant 0 : i32
    return %c0_i32, %c0_i32_0 : i32, i32
  }
  func.func @transform_4(%arg0: i32) -> (i32, i32) {
    %c0_i32 = arith.constant 0 : i32
    %c0_i32_0 = arith.constant 0 : i32
    %c0_i32_1 = arith.constant 0 : i32
    return %c0_i32, %c0_i32_0 : i32, i32
  }
  func.func @transform_5(%arg0: i32) -> (i32, i32) {
    %c0_i32 = arith.constant 0 : i32
    %c0_i32_0 = arith.constant 0 : i32
    %c0_i32_1 = arith.constant 0 : i32
    return %c0_i32, %c0_i32_0 : i32, i32
  }
  func.func @transform_6(%arg0: i32) -> (i32, i32) {
    %c0_i32 = arith.constant 0 : i32
    %c0_i32_0 = arith.constant 0 : i32
    %c0_i32_1 = arith.constant 0 : i32
    return %c0_i32, %c0_i32_0 : i32, i32
  }
  func.func @transform_7(%arg0: i32) -> (i32, i32) {
    %c0_i32 = arith.constant 0 : i32
    %c0_i32_0 = arith.constant 0 : i32
    %c0_i32_1 = arith.constant 0 : i32
    return %c0_i32, %c0_i32_0 : i32, i32
  }
  func.func @transform_8(%arg0: i32) -> (i32, i32) {
    %c0_i32 = arith.constant 0 : i32
    %c0_i32_0 = arith.constant 0 : i32
    return %arg0, %c0_i32 : i32, i32
  }
}

</mosaic_0001>

<llo_original>
// kernel: tpu_custom_call.1
$region0: #{tpu_custom_call.1}
  #allocation0 [shape = 'u32[]', space=smem, size = 0x4, offset = 0x4, fixed_abs, tag = 'smem constant byte address 0x4 - core index']
  #allocation1 [shape = 'u32[72,128]{1,0:T(1,128)}', space=vmem, size = 0x9000, scoped, tag = 'internal scratch']
  %s0 = inlined_call_operand.hbm [shape: f32[16,128], index: 0, kind: input, shape index: {}]
  %s1 = inlined_call_operand.hbm [shape: f32[16,128], index: 1, kind: input, shape index: {}]
  %s2 = inlined_call_operand.hbm [shape: f32[128,384], index: 2, kind: input, shape index: {}]
  %s3 = inlined_call_operand.hbm [shape: f32[1,384], index: 3, kind: input, shape index: {}]
  %s4 = inlined_call_operand.hbm [shape: f32[128,128], index: 4, kind: input, shape index: {}]
  %s5 = inlined_call_operand.vmem [shape: f32[1,128], index: 5, kind: input, shape index: {}]
  %s6 = inlined_call_operand.hbm [shape: f32[128,128], index: 6, kind: input, shape index: {}]
  %s7 = inlined_call_operand.vmem [shape: f32[1,128], index: 7, kind: input, shape index: {}]
  %s8 = inlined_call_operand.hbm [shape: f32[16,128], index: 8, kind: output, shape index: {}]
  %s9 = sld [smem:[#allocation0]]
  $region89: #{tpu_custom_call.1} parent=0
    _
  %s11 = ssub.s32 1, %s9
  %s12 = scalar_select 0, %s11, %s9
  $region1: #{tpu_custom_call.1} parent=0
    #allocation2 [shape = 'u8[8192]{0}', space=vmem, size = 0x2000, scoped, tag = 'input window, operand 0']
    #allocation3 [shape = 's32[2]{0}', space=sflag, size = 0x8, scoped, tag = 'scoped memory for tpu_custom_call.1']
    #allocation4 [shape = 's32[2]{0}', space=sflag, size = 0x8, scoped, tag = 'scoped memory for tpu_custom_call.1']
    #allocation5 [shape = 'u8[8192]{0}', space=vmem, size = 0x2000, scoped, tag = 'input window, operand 1, single buffered']
    #allocation6 [shape = 's32[1]{0}', space=sflag, size = 0x4, scoped, tag = 'scoped memory for tpu_custom_call.1']
    #allocation7 [shape = 'u8[196608]{0}', space=vmem, size = 0x30000, scoped, tag = 'input window, operand 2, single buffered']
    #allocation8 [shape = 'u8[1536]{0}', space=vmem, size = 0x800, scoped, tag = 'input window, operand 3, single buffered']
    #allocation9 [shape = 's32[1]{0}', space=sflag, size = 0x4, scoped, tag = 'scoped memory for tpu_custom_call.1']
    #allocation10 [shape = 'u8[65536]{0}', space=vmem, size = 0x10000, scoped, tag = 'input window, operand 4, single buffered']
    #allocation11 [shape = 'u8[65536]{0}', space=vmem, size = 0x10000, scoped, tag = 'input window, operand 6, single buffered']
    #allocation12 [shape = 's32[1]{0}', space=sflag, size = 0x4, scoped, tag = 'scoped memory for tpu_custom_call.1']
    #allocation13 [shape = 'u8[8192]{0}', space=vmem, size = 0x2000, scoped, tag = 'output window, operand 0']
    %13 = vsyncpa [#allocation3], 0
    %s14 = scalar_lea.sflag [#allocation3], 1
    %15 = vsyncpa %s14, 0
    %16 = vsyncpa [#allocation6], 0
    %17 = vsyncpa [#allocation9], 0
    %18 = vsyncpa [#allocation12], 0
    %19 = vsyncpa [#allocation4], 0
    %s20 = scalar_lea.sflag [#allocation4], 1
    %21 = vsyncpa %s20, 0
    loop: start=0, step=1, limit=4
    $region2: #{tpu_custom_call.1} parent=1 // loop_pre_header
      _
    $region3: #{tpu_custom_call.1} parent=1 // loop_header
      %s23 = sphi 0, %s27
      %p24 = scmp.ge.s32.totalorder %s23, 4
      %s33 = sphi 0, %s35
      %s36 = sphi 0, %s33
      %s37 = sphi 0, %s36
      %s53 = sphi 0, %s37
      %s57 = sphi 0, %s57
      %s59 = sphi 0, %s57
      %s60 = sphi 0, %s59
      %s74 = sphi 0, %s60
      %s78 = sphi 0, %s78
      %s80 = sphi 0, %s78
      %s81 = sphi 0, %s80
      %s95 = sphi 0, %s81
      %s99 = sphi 0, %s99
      %s101 = sphi 0, %s99
      %s102 = sphi 0, %s101
      %s116 = sphi 0, %s102
      %s120 = sphi 0, %s120
      %s122 = sphi 0, %s120
      %s123 = sphi 0, %s122
      %s137 = sphi 0, %s123
      %s141 = sphi 0, %s141
      %s143 = sphi 0, %s141
      %s144 = sphi 0, %s143
      %s158 = sphi 0, %s144
      %s162 = sphi 0, %s162
      %s164 = sphi 0, %s162
      %s165 = sphi 0, %s164
      %s179 = sphi 0, %s165
      %s183 = sphi 0, %s183
      %s185 = sphi 0, %s183
      %s186 = sphi 0, %s185
      %s200 = sphi 0, %s186
      %s206 = sphi 0, %s208
      %s209 = sphi 0, %s206
      %s210 = sphi 0, %s209
      %s226 = sphi 0, %s210
    $region4: #{tpu_custom_call.1} parent=1 // loop_header_branch
      %26 = sbr.rel (%p24) target = $region8
    $region5: #{tpu_custom_call.1} parent=1 // loop_body
      %s28 = ssub.s32 %s23, 1
      %s29 = ssub.s32 %s23, 2
      %s30 = sadd.s32 %s23, 1
      %s31 = ssub.s32 %s23, %s30
      %p32 = scmp.eq.s32.totalorder %s31, 0
      %s34 = sadd.s32 %s33, 1
      %s35 = scalar_select %p32, %s33, %s34
      %p38 = pneg %p32
      %p39 = scmp.eq.s32.totalorder %s23, 1
      %p40 = por %p38, %p39
      %p41 = scmp.ne.s32.totalorder %s33, %s36
      %p42 = scmp.eq.s32.totalorder %s23, 0
      %p43 = por %p41, %p42
      %p44 = scmp.ne.s32.totalorder %s33, %s36
      %p45 = scmp.eq.s32.totalorder %s28, 1
      %p46 = por %p44, %p45
      %p47 = scmp.ne.s32.totalorder %s36, %s37
      %p48 = scmp.eq.s32.totalorder %s28, 0
      %p49 = por %p47, %p48
      %p50 = scmp.ne.s32.totalorder %s36, %s37
      %p51 = scmp.eq.s32.totalorder %s29, 1
      %p52 = por %p50, %p51
      %p54 = scmp.ne.s32.totalorder %s37, %s53
      %p55 = scmp.eq.s32.totalorder %s29, 0
      %p56 = por %p54, %p55
      %s58 = sadd.s32 %s57, 1
      %p61 = scmp.eq.s32.totalorder %s23, 1
      %p62 = scmp.ne.s32.totalorder %s57, %s59
      %p63 = scmp.eq.s32.totalorder %s23, 0
      %p64 = por %p62, %p63
      %p65 = scmp.ne.s32.totalorder %s57, %s59
      %p66 = scmp.eq.s32.totalorder %s28, 1
      %p67 = por %p65, %p66
      %p68 = scmp.ne.s32.totalorder %s59, %s60
      %p69 = scmp.eq.s32.totalorder %s28, 0
      %p70 = por %p68, %p69
      %p71 = scmp.ne.s32.totalorder %s59, %s60
      %p72 = scmp.eq.s32.totalorder %s29, 1
      %p73 = por %p71, %p72
      %p75 = scmp.ne.s32.totalorder %s60, %s74
      %p76 = scmp.eq.s32.totalorder %s29, 0
      %p77 = por %p75, %p76
      %s79 = sadd.s32 %s78, 1
      %p82 = scmp.eq.s32.totalorder %s23, 1
      %p83 = scmp.ne.s32.totalorder %s78, %s80
      %p84 = scmp.eq.s32.totalorder %s23, 0
      %p85 = por %p83, %p84
      %p86 = scmp.ne.s32.totalorder %s78, %s80
      %p87 = scmp.eq.s32.totalorder %s28, 1
      %p88 = por %p86, %p87
      %p89 = scmp.ne.s32.totalorder %s80, %s81
      %p90 = scmp.eq.s32.totalorder %s28, 0
      %p91 = por %p89, %p90
      %p92 = scmp.ne.s32.totalorder %s80, %s81
      %p93 = scmp.eq.s32.totalorder %s29, 1
      %p94 = por %p92, %p93
      %p96 = scmp.ne.s32.totalorder %s81, %s95
      %p97 = scmp.eq.s32.totalorder %s29, 0
      %p98 = por %p96, %p97
      %s100 = sadd.s32 %s99, 1
      %p103 = scmp.eq.s32.totalorder %s23, 1
      %p104 = scmp.ne.s32.totalorder %s99, %s101
      %p105 = scmp.eq.s32.totalorder %s23, 0
      %p106 = por %p104, %p105
      %p107 = scmp.ne.s32.totalorder %s99, %s101
      %p108 = scmp.eq.s32.totalorder %s28, 1
      %p109 = por %p107, %p108
      %p110 = scmp.ne.s32.totalorder %s101, %s102
      %p111 = scmp.eq.s32.totalorder %s28, 0
      %p112 = por %p110, %p111
      %p113 = scmp.ne.s32.totalorder %s101, %s102
      %p114 = scmp.eq.s32.totalorder %s29, 1
      %p115 = por %p113, %p114
      %p117 = scmp.ne.s32.totalorder %s102, %s116
      %p118 = scmp.eq.s32.totalorder %s29, 0
      %p119 = por %p117, %p118
      %s121 = sadd.s32 %s120, 1
      %p124 = scmp.eq.s32.totalorder %s23, 1
      %p125 = scmp.ne.s32.totalorder %s120, %s122
      %p126 = scmp.eq.s32.totalorder %s23, 0
      %p127 = por %p125, %p126
      %p128 = scmp.ne.s32.totalorder %s120, %s122
      %p129 = scmp.eq.s32.totalorder %s28, 1
      %p130 = por %p128, %p129
      %p131 = scmp.ne.s32.totalorder %s122, %s123
      %p132 = scmp.eq.s32.totalorder %s28, 0
      %p133 = por %p131, %p132
      %p134 = scmp.ne.s32.totalorder %s122, %s123
      %p135 = scmp.eq.s32.totalorder %s29, 1
      %p136 = por %p134, %p135
      %p138 = scmp.ne.s32.totalorder %s123, %s137
      %p139 = scmp.eq.s32.totalorder %s29, 0
      %p140 = por %p138, %p139
      %s142 = sadd.s32 %s141, 1
      %p145 = scmp.eq.s32.totalorder %s23, 1
      %p146 = scmp.ne.s32.totalorder %s141, %s143
      %p147 = scmp.eq.s32.totalorder %s23, 0
      %p148 = por %p146, %p147
      %p149 = scmp.ne.s32.totalorder %s141, %s143
      %p150 = scmp.eq.s32.totalorder %s28, 1
      %p151 = por %p149, %p150
      %p152 = scmp.ne.s32.totalorder %s143, %s144
      %p153 = scmp.eq.s32.totalorder %s28, 0
      %p154 = por %p152, %p153
      %p155 = scmp.ne.s32.totalorder %s143, %s144
      %p156 = scmp.eq.s32.totalorder %s29, 1
      %p157 = por %p155, %p156
      %p159 = scmp.ne.s32.totalorder %s144, %s158
      %p160 = scmp.eq.s32.totalorder %s29, 0
      %p161 = por %p159, %p160
      %s163 = sadd.s32 %s162, 1
      %p166 = scmp.eq.s32.totalorder %s23, 1
      %p167 = scmp.ne.s32.totalorder %s162, %s164
      %p168 = scmp.eq.s32.totalorder %s23, 0
      %p169 = por %p167, %p168
      %p170 = scmp.ne.s32.totalorder %s162, %s164
      %p171 = scmp.eq.s32.totalorder %s28, 1
      %p172 = por %p170, %p171
      %p173 = scmp.ne.s32.totalorder %s164, %s165
      %p174 = scmp.eq.s32.totalorder %s28, 0
      %p175 = por %p173, %p174
      %p176 = scmp.ne.s32.totalorder %s164, %s165
      %p177 = scmp.eq.s32.totalorder %s29, 1
      %p178 = por %p176, %p177
      %p180 = scmp.ne.s32.totalorder %s165, %s179
      %p181 = scmp.eq.s32.totalorder %s29, 0
      %p182 = por %p180, %p181
      %s184 = sadd.s32 %s183, 1
      %p187 = scmp.eq.s32.totalorder %s23, 1
      %p188 = scmp.ne.s32.totalorder %s183, %s185
      %p189 = scmp.eq.s32.totalorder %s23, 0
      %p190 = por %p188, %p189
      %p191 = scmp.ne.s32.totalorder %s183, %s185
      %p192 = scmp.eq.s32.totalorder %s28, 1
      %p193 = por %p191, %p192
      %p194 = scmp.ne.s32.totalorder %s185, %s186
      %p195 = scmp.eq.s32.totalorder %s28, 0
      %p196 = por %p194, %p195
      %p197 = scmp.ne.s32.totalorder %s185, %s186
      %p198 = scmp.eq.s32.totalorder %s29, 1
      %p199 = por %p197, %p198
      %p201 = scmp.ne.s32.totalorder %s186, %s200
      %p202 = scmp.eq.s32.totalorder %s29, 0
      %p203 = por %p201, %p202
      %s204 = ssub.s32 %s23, %s30
      %p205 = scmp.eq.s32.totalorder %s204, 0
      %s207 = sadd.s32 %s206, 1
      %s208 = scalar_select %p205, %s206, %s207
      %p211 = pneg %p205
      %p212 = scmp.eq.s32.totalorder %s23, 1
      %p213 = por %p211, %p212
      %p214 = scmp.ne.s32.totalorder %s206, %s209
      %p215 = scmp.eq.s32.totalorder %s23, 0
      %p216 = por %p214, %p215
      %p217 = scmp.ne.s32.totalorder %s206, %s209
      %p218 = scmp.eq.s32.totalorder %s28, 1
      %p219 = por %p217, %p218
      %p220 = scmp.ne.s32.totalorder %s209, %s210
      %p221 = scmp.eq.s32.totalorder %s28, 0
      %p222 = por %p220, %p221
      %p223 = scmp.ne.s32.totalorder %s209, %s210
      %p224 = scmp.eq.s32.totalorder %s29, 1
      %p225 = por %p223, %p224
      %p227 = scmp.ne.s32.totalorder %s210, %s226
      %p228 = scmp.eq.s32.totalorder %s29, 0
      %p229 = por %p227, %p228
      %p230 = scmp.le.s32.totalorder 1, %s23
      %p231 = scmp.lt.s32.totalorder %s23, 3
      %p232 = pnand %p230, %p231
      %p233 = pneg %p232
      // Predicated region
      $region9: #{tpu_custom_call.1} parent=5 // pred_check
        _
      $region10: #{tpu_custom_call.1} parent=5 // pred_check_branch
        %235 = sbr.rel (%p232) target = $region12
      $region11: #{tpu_custom_call.1} parent=5 // pred_region
        %s236 = ssub.s32 %s23, 1
        // Predicated region
        $region13: #{tpu_custom_call.1} parent=11 // pred_check
          %p237 = pneg %p70
        $region14: #{tpu_custom_call.1} parent=11 // pred_check_branch
          %239 = sbr.rel (%p237) target = $region16
        $region15: #{tpu_custom_call.1} parent=11 // pred_region
          %241 = vsyncadd [#allocation6], 0
          %s242 = sshll.u32 %s1, 4
          %s243 = int_to_ptr.hbm [resolvable:$true] %s242
          %s244 = sshll.u32 [#allocation5], 4
          %s245 = int_to_ptr.vmem [resolvable:$true] %s244
          %250 = dma.hbm_to_vmem [thread:$0]  %s243, 256, %s245, [#allocation6], 128, 128, 8
        $region16: #{tpu_custom_call.1} parent=11 // pred_fallthru
          _
        // Predicated region
        $region17: #{tpu_custom_call.1} parent=11 // pred_check
          %p251 = pneg %p91
        $region18: #{tpu_custom_call.1} parent=11 // pred_check_branch
          %253 = sbr.rel (%p251) target = $region20
        $region19: #{tpu_custom_call.1} parent=11 // pred_region
          %255 = vsyncadd [#allocation6], 0
          %s256 = sshll.u32 %s2, 4
          %s257 = int_to_ptr.hbm [resolvable:$true] %s256
          %s258 = sshll.u32 [#allocation7], 4
          %s259 = int_to_ptr.vmem [resolvable:$true] %s258
          %264 = dma.hbm_to_vmem [thread:$0]  %s257, 6144, %s259, [#allocation6], 384, 384, 24
        $region20: #{tpu_custom_call.1} parent=11 // pred_fallthru
          _
        // Predicated region
        $region21: #{tpu_custom_call.1} parent=11 // pred_check
          %p265 = pneg %p112
        $region22: #{tpu_custom_call.1} parent=11 // pred_check_branch
          %267 = sbr.rel (%p265) target = $region24
        $region23: #{tpu_custom_call.1} parent=11 // pred_region
          %269 = vsyncadd [#allocation9], 0
          %s271 = sshll.u32 %s3, 4
          %s272 = int_to_ptr.hbm [resolvable:$true] %s271
          %s273 = sshll.u32 [#allocation8], 4
          %s274 = int_to_ptr.vmem [resolvable:$true] %s273
          %276 = dma.hbm_to_vmem [thread:$0]  %s272, 48, %s274, [#allocation9]
        $region24: #{tpu_custom_call.1} parent=11 // pred_fallthru
          _
        // Predicated region
        $region25: #{tpu_custom_call.1} parent=11 // pred_check
          %p277 = pneg %p133
        $region26: #{tpu_custom_call.1} parent=11 // pred_check_branch
          %279 = sbr.rel (%p277) target = $region28
        $region27: #{tpu_custom_call.1} parent=11 // pred_region
          %281 = vsyncadd [#allocation9], 0
          %s282 = sshll.u32 %s4, 4
          %s283 = int_to_ptr.hbm [resolvable:$true] %s282
          %s284 = sshll.u32 [#allocation10], 4
          %s285 = int_to_ptr.vmem [resolvable:$true] %s284
          %290 = dma.hbm_to_vmem [thread:$0]  %s283, 2048, %s285, [#allocation9], 128, 128, 8
        $region28: #{tpu_custom_call.1} parent=11 // pred_fallthru
          _
        // Predicated region
        $region29: #{tpu_custom_call.1} parent=11 // pred_check
          %p291 = pneg %p154
        $region30: #{tpu_custom_call.1} parent=11 // pred_check_branch
          %293 = sbr.rel (%p291) target = $region32
        $region31: #{tpu_custom_call.1} parent=11 // pred_region
          _
        $region32: #{tpu_custom_call.1} parent=11 // pred_fallthru
          _
        // Predicated region
        $region33: #{tpu_custom_call.1} parent=11 // pred_check
          %p294 = pneg %p175
        $region34: #{tpu_custom_call.1} parent=11 // pred_check_branch
          %296 = sbr.rel (%p294) target = $region36
        $region35: #{tpu_custom_call.1} parent=11 // pred_region
          %298 = vsyncadd [#allocation12], 0
          %s299 = sshll.u32 %s6, 4
          %s300 = int_to_ptr.hbm [resolvable:$true] %s299
          %s301 = sshll.u32 [#allocation11], 4
          %s302 = int_to_ptr.vmem [resolvable:$true] %s301
          %307 = dma.hbm_to_vmem [thread:$0]  %s300, 2048, %s302, [#allocation12], 128, 128, 8
        $region36: #{tpu_custom_call.1} parent=11 // pred_fallthru
          _
        // Predicated region
        $region37: #{tpu_custom_call.1} parent=11 // pred_check
          %p308 = pneg %p196
        $region38: #{tpu_custom_call.1} parent=11 // pred_check_branch
          %310 = sbr.rel (%p308) target = $region40
        $region39: #{tpu_custom_call.1} parent=11 // pred_region
          _
        $region40: #{tpu_custom_call.1} parent=11 // pred_fallthru
          _
      $region12: #{tpu_custom_call.1} parent=5 // pred_fallthru
        _
      %p311 = scmp.lt.s32.totalorder %s23, 2
      // Predicated region
      $region41: #{tpu_custom_call.1} parent=5 // pred_check
        %p312 = pneg %p311
      $region42: #{tpu_custom_call.1} parent=5 // pred_check_branch
        %314 = sbr.rel (%p312) target = $region44
      $region43: #{tpu_custom_call.1} parent=5 // pred_region
        // Predicated region
        $region45: #{tpu_custom_call.1} parent=43 // pred_check
          %p315 = pneg %p43
        $region46: #{tpu_custom_call.1} parent=43 // pred_check_branch
          %317 = sbr.rel (%p315) target = $region48
        $region47: #{tpu_custom_call.1} parent=43 // pred_region
          %s318 = sand.u32 %s33, 1
          %s319 = scalar_lea.sflag [#allocation3], %s318
          %s320 = sand.u32 %s33, 1
          %s321 = smul.addr %s320, 8
          %s322 = scalar_lea.vmem [#allocation2], %s321
          %324 = vsyncadd %s319, 0
          %s325 = smul.addr %s23, 8
          %s326 = scalar_lea.hbm %s0, %s325
          %s328 = sshll.u32 %s326, 4
          %s329 = int_to_ptr.hbm [resolvable:$true] %s328
          %s330 = sshll.u32 %s322, 4
          %s331 = int_to_ptr.vmem [resolvable:$true] %s330
          %333 = dma.hbm_to_vmem [thread:$0]  %s329, 128, %s331, %s319
        $region48: #{tpu_custom_call.1} parent=43 // pred_fallthru
          _
      $region44: #{tpu_custom_call.1} parent=5 // pred_fallthru
        _
      %p334 = scmp.le.s32.totalorder 1, %s23
      %p335 = scmp.lt.s32.totalorder %s23, 3
      %p336 = pnand %p334, %p335
      %p337 = pneg %p336
      // Predicated region
      $region49: #{tpu_custom_call.1} parent=5 // pred_check
        _
      $region50: #{tpu_custom_call.1} parent=5 // pred_check_branch
        %339 = sbr.rel (%p336) target = $region52
      $region51: #{tpu_custom_call.1} parent=5 // pred_region
        %s340 = ssub.s32 %s23, 1
        %s341 = sand.u32 %s36, 1
        %s342 = scalar_lea.sflag [#allocation3], %s341
        %s343 = sand.u32 %s36, 1
        %s344 = smul.addr %s343, 8
        %s345 = scalar_lea.vmem [#allocation2], %s344
        // Predicated region
        $region53: #{tpu_custom_call.1} parent=51 // pred_check
          %p346 = pneg %p49
        $region54: #{tpu_custom_call.1} parent=51 // pred_check_branch
          %348 = sbr.rel (%p346) target = $region56
        $region55: #{tpu_custom_call.1} parent=51 // pred_region
          %350 = dma.done %s342, 128
        $region56: #{tpu_custom_call.1} parent=51 // pred_fallthru
          _
        // Predicated region
        $region57: #{tpu_custom_call.1} parent=51 // pred_check
          %p351 = pneg %p70
        $region58: #{tpu_custom_call.1} parent=51 // pred_check_branch
          %353 = sbr.rel (%p351) target = $region60
        $region59: #{tpu_custom_call.1} parent=51 // pred_region
          %355 = dma.done [#allocation6], 256
        $region60: #{tpu_custom_call.1} parent=51 // pred_fallthru
          _
        // Predicated region
        $region61: #{tpu_custom_call.1} parent=51 // pred_check
          %p356 = pneg %p91
        $region62: #{tpu_custom_call.1} parent=51 // pred_check_branch
          %358 = sbr.rel (%p356) target = $region64
        $region63: #{tpu_custom_call.1} parent=51 // pred_region
          %360 = dma.done [#allocation6], 6144
        $region64: #{tpu_custom_call.1} parent=51 // pred_fallthru
          _
        // Predicated region
        $region65: #{tpu_custom_call.1} parent=51 // pred_check
          %p361 = pneg %p112
        $region66: #{tpu_custom_call.1} parent=51 // pred_check_branch
          %363 = sbr.rel (%p361) target = $region68
        $region67: #{tpu_custom_call.1} parent=51 // pred_region
          %365 = dma.done [#allocation9], 48
        $region68: #{tpu_custom_call.1} parent=51 // pred_fallthru
          _
        // Predicated region
        $region69: #{tpu_custom_call.1} parent=51 // pred_check
          %p366 = pneg %p133
        $region70: #{tpu_custom_call.1} parent=51 // pred_check_branch
          %368 = sbr.rel (%p366) target = $region72
        $region71: #{tpu_custom_call.1} parent=51 // pred_region
          %370 = dma.done [#allocation9], 2048
        $region72: #{tpu_custom_call.1} parent=51 // pred_fallthru
          _
        // Predicated region
        $region73: #{tpu_custom_call.1} parent=51 // pred_check
          %p371 = pneg %p175
        $region74: #{tpu_custom_call.1} parent=51 // pred_check_branch
          %373 = sbr.rel (%p371) target = $region76
        $region75: #{tpu_custom_call.1} parent=51 // pred_region
          %375 = dma.done [#allocation12], 2048
        $region76: #{tpu_custom_call.1} parent=51 // pred_fallthru
          _
        %s376 = sand.u32 %s36, 1
        %s377 = scalar_lea.sflag [#allocation3], %s376
        %s378 = sand.u32 %s36, 1
        %s379 = smul.addr %s378, 8
        %s380 = scalar_lea.vmem [#allocation2], %s379
        %p381 = pneg %p49
        %p382 = pneg %p46
        %p383 = pneg %p70
        %p384 = pneg %p67
        %p385 = pneg %p91
        %p386 = pneg %p88
        %p387 = pneg %p112
        %p388 = pneg %p109
        %p389 = pneg %p133
        %p390 = pneg %p130
        %p391 = pneg %p154
        %p392 = pneg %p151
        %p393 = pneg %p175
        %p394 = pneg %p172
        %p395 = pneg %p196
        %p396 = pneg %p193
        %p397 = pneg %p222
        %p398 = pneg %p219
        %s399 = sand.u32 %s209, 1
        %s400 = scalar_lea.sflag [#allocation4], %s399
        %s401 = sand.u32 %s209, 1
        %s402 = smul.addr %s401, 8
        %s403 = scalar_lea.vmem [#allocation13], %s402
        %v404 = vld [vmem:[%s345] sm:$0xff]
        %v405 = vld [vmem:[#allocation5] sm:$0xff]
        %v406 = vld [vmem:[#allocation5 + $0x8] sm:$0xff]
        %v407 = vld [vmem:[#allocation7] sm:$0xff]
        %v408 = vld [vmem:[#allocation7 + $0x18] sm:$0xff]
        %v409 = vld [vmem:[#allocation7 + $0x30] sm:$0xff]
        %v410 = vld [vmem:[#allocation7 + $0x48] sm:$0xff]
        %v411 = vld [vmem:[#allocation7 + $0x60] sm:$0xff]
        %v412 = vld [vmem:[#allocation7 + $0x78] sm:$0xff]
        %v413 = vld [vmem:[#allocation7 + $0x90] sm:$0xff]
        %v414 = vld [vmem:[#allocation7 + $0xa8] sm:$0xff]
        %v415 = vld [vmem:[#allocation7 + $0xc0] sm:$0xff]
        %v416 = vld [vmem:[#allocation7 + $0xd8] sm:$0xff]
        %v417 = vld [vmem:[#allocation7 + $0xf0] sm:$0xff]
        %v418 = vld [vmem:[#allocation7 + $0x108] sm:$0xff]
        %v419 = vld [vmem:[#allocation7 + $0x120] sm:$0xff]
        %v420 = vld [vmem:[#allocation7 + $0x138] sm:$0xff]
        %v421 = vld [vmem:[#allocation7 + $0x150] sm:$0xff]
        %v422 = vld [vmem:[#allocation7 + $0x168] sm:$0xff]
        %v423 = vld [vmem:[#allocation8] sm:$0x1]
        %v425 = vperm.slane %v423, 0
        %427 = vmatpush.msra.mxu0 %v422
        %428 = vmatpush.msra.mxu0 %v421
        %429 = vmatpush.msra.mxu0 %v420
        %430 = vmatpush.msra.mxu0 %v419
        %431 = vmatpush.msra.mxu0 %v418
        %432 = vmatpush.msra.mxu0 %v417
        %433 = vmatpush.msra.mxu0 %v416
        %434 = vmatpush.msra.mxu0 %v415
        %435 = vmatpush.msra.mxu0 %v414
        %436 = vmatpush.msra.mxu0 %v413
        %437 = vmatpush.msra.mxu0 %v412
        %438 = vmatpush.msra.mxu0 %v411
        %439 = vmatpush.msra.mxu0 %v410
        %440 = vmatpush.msra.mxu0 %v409
        %441 = vmatpush.msra.mxu0 %v408
        %442 = vmatpush.msra.mxu0 %v407
        %443 = vmatmul.f32.gmra.mxu0 %v404
        %v444 = vpop.f32.mrf.mxu0
        %v445 = vadd.f32 %v425, %v444
        %446 = vdwg.mxu0
        %v447 = vld [vmem:[#allocation7 + $0x8] sm:$0xff]
        %v448 = vld [vmem:[#allocation7 + $0x10] sm:$0xff]
        %v449 = vld [vmem:[#allocation7 + $0x20] sm:$0xff]
        %v450 = vld [vmem:[#allocation7 + $0x28] sm:$0xff]
        %v451 = vld [vmem:[#allocation7 + $0x38] sm:$0xff]
        %v452 = vld [vmem:[#allocation7 + $0x40] sm:$0xff]
        %v453 = vld [vmem:[#allocation7 + $0x50] sm:$0xff]
        %v454 = vld [vmem:[#allocation7 + $0x58] sm:$0xff]
        %v455 = vld [vmem:[#allocation7 + $0x68] sm:$0xff]
        %v456 = vld [vmem:[#allocation7 + $0x70] sm:$0xff]
        %v457 = vld [vmem:[#allocation7 + $0x80] sm:$0xff]
        %v458 = vld [vmem:[#allocation7 + $0x88] sm:$0xff]
        %v459 = vld [vmem:[#allocation7 + $0x98] sm:$0xff]
        %v460 = vld [vmem:[#allocation7 + $0xa0] sm:$0xff]
        %v461 = vld [vmem:[#allocation7 + $0xb0] sm:$0xff]
        %v462 = vld [vmem:[#allocation7 + $0xb8] sm:$0xff]
        %v463 = vld [vmem:[#allocation7 + $0xc8] sm:$0xff]
        %v464 = vld [vmem:[#allocation7 + $0xd0] sm:$0xff]
        %v465 = vld [vmem:[#allocation7 + $0xe0] sm:$0xff]
        %v466 = vld [vmem:[#allocation7 + $0xe8] sm:$0xff]
        %v467 = vld [vmem:[#allocation7 + $0xf8] sm:$0xff]
        %v468 = vld [vmem:[#allocation7 + $0x100] sm:$0xff]
        %v469 = vld [vmem:[#allocation7 + $0x110] sm:$0xff]
        %v470 = vld [vmem:[#allocation7 + $0x118] sm:$0xff]
        %v471 = vld [vmem:[#allocation7 + $0x128] sm:$0xff]
        %v472 = vld [vmem:[#allocation7 + $0x130] sm:$0xff]
        %v473 = vld [vmem:[#allocation7 + $0x140] sm:$0xff]
        %v474 = vld [vmem:[#allocation7 + $0x148] sm:$0xff]
        %v475 = vld [vmem:[#allocation7 + $0x158] sm:$0xff]
        %v476 = vld [vmem:[#allocation7 + $0x160] sm:$0xff]
        %v477 = vld [vmem:[#allocation7 + $0x170] sm:$0xff]
        %v478 = vld [vmem:[#allocation7 + $0x178] sm:$0xff]
        %v479 = vld [vmem:[#allocation8 + $0x1] sm:$0x3]
        %v481 = vperm.slane %v479, 0
        %v482 = vperm.slane %v479, 1
        %485 = vmatpush.msra.mxu0 %v477
        %486 = vmatpush.msra.mxu0 %v475
        %487 = vmatpush.msra.mxu0 %v473
        %488 = vmatpush.msra.mxu0 %v471
        %489 = vmatpush.msra.mxu0 %v469
        %490 = vmatpush.msra.mxu0 %v467
        %491 = vmatpush.msra.mxu0 %v465
        %492 = vmatpush.msra.mxu0 %v463
        %493 = vmatpush.msra.mxu0 %v461
        %494 = vmatpush.msra.mxu0 %v459
        %495 = vmatpush.msra.mxu0 %v457
        %496 = vmatpush.msra.mxu0 %v455
        %497 = vmatpush.msra.mxu0 %v453
        %498 = vmatpush.msra.mxu0 %v451
        %499 = vmatpush.msra.mxu0 %v449
        %500 = vmatpush.msra.mxu0 %v447
        %501 = vmatmul.f32.gmra.mxu0 %v405
        %v502 = vpop.f32.mrf.mxu0
        %v503 = vadd.f32 %v481, %v502
        %504 = vmatmul.f32.gmra.mxu0 %v406
        %v505 = vpop.f32.mrf.mxu0
        %v506 = vadd.f32 %v481, %v505
        %507 = vdwg.mxu0
        %508 = vmatpush.msra.mxu0 %v478
        %509 = vmatpush.msra.mxu0 %v476
        %510 = vmatpush.msra.mxu0 %v474
        %511 = vmatpush.msra.mxu0 %v472
        %512 = vmatpush.msra.mxu0 %v470
        %513 = vmatpush.msra.mxu0 %v468
        %514 = vmatpush.msra.mxu0 %v466
        %515 = vmatpush.msra.mxu0 %v464
        %516 = vmatpush.msra.mxu0 %v462
        %517 = vmatpush.msra.mxu0 %v460
        %518 = vmatpush.msra.mxu0 %v458
        %519 = vmatpush.msra.mxu0 %v456
        %520 = vmatpush.msra.mxu0 %v454
        %521 = vmatpush.msra.mxu0 %v452
        %522 = vmatpush.msra.mxu0 %v450
        %523 = vmatpush.msra.mxu0 %v448
        %524 = vmatmul.f32.gmra.mxu0 %v405
        %v525 = vpop.f32.mrf.mxu0
        %v526 = vadd.f32 %v482, %v525
        %527 = vmatmul.f32.gmra.mxu0 %v406
        %v528 = vpop.f32.mrf.mxu0
        %v529 = vadd.f32 %v482, %v528
        %530 = vdwg.mxu0
        %531 = vmatpush.xpose.msra.mxu0 0.0
        %532 = vmatpush.xpose.msra.mxu0 0.0
        %533 = vmatpush.xpose.msra.mxu0 0.0
        %534 = vmatpush.xpose.msra.mxu0 0.0
        %535 = vmatpush.xpose.msra.mxu0 0.0
        %536 = vmatpush.xpose.msra.mxu0 0.0
        %537 = vmatpush.xpose.msra.mxu0 0.0
        %538 = vmatpush.xpose.msra.mxu0 0.0
        %539 = vmatpush.xpose.msra.mxu0 0.0
        %540 = vmatpush.xpose.msra.mxu0 0.0
        %541 = vmatpush.xpose.msra.mxu0 0.0
        %542 = vmatpush.xpose.msra.mxu0 0.0
        %543 = vmatpush.xpose.msra.mxu0 0.0
        %544 = vmatpush.xpose.msra.mxu0 0.0
        %545 = vmatpush.xpose.msra.mxu0 %v506
        %546 = vmatpush.xpose.msra.mxu0 %v503
        %547 = vmatmul.f32.gmra.mxu0 %v445
        %v548 = vpop.f32.mrf.mxu0
        %v549 = vadd.f32 0.0, %v548
        %550 = vdwg.mxu0
        %vm551 = vcmask 130048
        %v553 = vsel %vm551, %v549, 0
        %555 = vmatpush.msra.mxu0 0.0
        %556 = vmatpush.msra.mxu0 0.0
        %557 = vmatpush.msra.mxu0 0.0
        %558 = vmatpush.msra.mxu0 0.0
        %559 = vmatpush.msra.mxu0 0.0
        %560 = vmatpush.msra.mxu0 0.0
        %561 = vmatpush.msra.mxu0 0.0
        %562 = vmatpush.msra.mxu0 0.0
        %563 = vmatpush.msra.mxu0 0.0
        %564 = vmatpush.msra.mxu0 0.0
        %565 = vmatpush.msra.mxu0 0.0
        %566 = vmatpush.msra.mxu0 0.0
        %567 = vmatpush.msra.mxu0 0.0
        %568 = vmatpush.msra.mxu0 0.0
        %569 = vmatpush.msra.mxu0 %v529
        %570 = vmatpush.msra.mxu0 %v526
        %571 = vmatmul.f32.gmra.mxu0 %v553
        %v572 = vpop.f32.mrf.mxu0
        %v573 = vadd.f32 0.0, %v572
        %574 = vdwg.mxu0
        %v575 = vld [vmem:[#allocation10] sm:$0xff]
        %v576 = vld [vmem:[#allocation10 + $0x8] sm:$0xff]
        %v577 = vld [vmem:[#allocation10 + $0x10] sm:$0xff]
        %v578 = vld [vmem:[#allocation10 + $0x18] sm:$0xff]
        %v579 = vld [vmem:[#allocation10 + $0x20] sm:$0xff]
        %v580 = vld [vmem:[#allocation10 + $0x28] sm:$0xff]
        %v581 = vld [vmem:[#allocation10 + $0x30] sm:$0xff]
        %v582 = vld [vmem:[#allocation10 + $0x38] sm:$0xff]
        %v583 = vld [vmem:[#allocation10 + $0x40] sm:$0xff]
        %v584 = vld [vmem:[#allocation10 + $0x48] sm:$0xff]
        %v585 = vld [vmem:[#allocation10 + $0x50] sm:$0xff]
        %v586 = vld [vmem:[#allocation10 + $0x58] sm:$0xff]
        %v587 = vld [vmem:[#allocation10 + $0x60] sm:$0xff]
        %v588 = vld [vmem:[#allocation10 + $0x68] sm:$0xff]
        %v589 = vld [vmem:[#allocation10 + $0x70] sm:$0xff]
        %v590 = vld [vmem:[#allocation10 + $0x78] sm:$0xff]
        %v591 = vld [vmem:[%s5] sm:$0x1]
        %v593 = vperm.slane %v591, 0
        %595 = vmatpush.msra.mxu0 %v590
        %596 = vmatpush.msra.mxu0 %v589
        %597 = vmatpush.msra.mxu0 %v588
        %598 = vmatpush.msra.mxu0 %v587
        %599 = vmatpush.msra.mxu0 %v586
        %600 = vmatpush.msra.mxu0 %v585
        %601 = vmatpush.msra.mxu0 %v584
        %602 = vmatpush.msra.mxu0 %v583
        %603 = vmatpush.msra.mxu0 %v582
        %604 = vmatpush.msra.mxu0 %v581
        %605 = vmatpush.msra.mxu0 %v580
        %606 = vmatpush.msra.mxu0 %v579
        %607 = vmatpush.msra.mxu0 %v578
        %608 = vmatpush.msra.mxu0 %v577
        %609 = vmatpush.msra.mxu0 %v576
        %610 = vmatpush.msra.mxu0 %v575
        %611 = vmatmul.f32.gmra.mxu0 %v573
        %v612 = vpop.f32.mrf.mxu0
        %v613 = vadd.f32 %v593, %v612
        %614 = vdwg.mxu0
        %v615 = vld [vmem:[#allocation11] sm:$0xff]
        %v616 = vld [vmem:[#allocation11 + $0x8] sm:$0xff]
        %v617 = vld [vmem:[#allocation11 + $0x10] sm:$0xff]
        %v618 = vld [vmem:[#allocation11 + $0x18] sm:$0xff]
        %v619 = vld [vmem:[#allocation11 + $0x20] sm:$0xff]
        %v620 = vld [vmem:[#allocation11 + $0x28] sm:$0xff]
        %v621 = vld [vmem:[#allocation11 + $0x30] sm:$0xff]
        %v622 = vld [vmem:[#allocation11 + $0x38] sm:$0xff]
        %v623 = vld [vmem:[#allocation11 + $0x40] sm:$0xff]
        %v624 = vld [vmem:[#allocation11 + $0x48] sm:$0xff]
        %v625 = vld [vmem:[#allocation11 + $0x50] sm:$0xff]
        %v626 = vld [vmem:[#allocation11 + $0x58] sm:$0xff]
        %v627 = vld [vmem:[#allocation11 + $0x60] sm:$0xff]
        %v628 = vld [vmem:[#allocation11 + $0x68] sm:$0xff]
        %v629 = vld [vmem:[#allocation11 + $0x70] sm:$0xff]
        %v630 = vld [vmem:[#allocation11 + $0x78] sm:$0xff]
        %v631 = vld [vmem:[%s7] sm:$0x1]
        %v633 = vperm.slane %v631, 0
        %635 = vmatpush.msra.mxu0 %v630
        %636 = vmatpush.msra.mxu0 %v629
        %637 = vmatpush.msra.mxu0 %v628
        %638 = vmatpush.msra.mxu0 %v627
        %639 = vmatpush.msra.mxu0 %v626
        %640 = vmatpush.msra.mxu0 %v625
        %641 = vmatpush.msra.mxu0 %v624
        %642 = vmatpush.msra.mxu0 %v623
        %643 = vmatpush.msra.mxu0 %v622
        %644 = vmatpush.msra.mxu0 %v621
        %645 = vmatpush.msra.mxu0 %v620
        %646 = vmatpush.msra.mxu0 %v619
        %647 = vmatpush.msra.mxu0 %v618
        %648 = vmatpush.msra.mxu0 %v617
        %649 = vmatpush.msra.mxu0 %v616
        %650 = vmatpush.msra.mxu0 %v615
        %651 = vmatmul.f32.gmra.mxu0 %v613
        %v652 = vpop.f32.mrf.mxu0
        %v653 = vadd.f32 %v633, %v652
        %654 = vdwg.mxu0
        %655 = vst [vmem:[%s403] sm:$0xff] %v653
        %s656 = sand.u32 %s209, 1
        %s657 = scalar_lea.sflag [#allocation4], %s656
        %s658 = sand.u32 %s209, 1
        %s659 = smul.addr %s658, 8
        %s660 = scalar_lea.vmem [#allocation13], %s659
        // Predicated region
        $region77: #{tpu_custom_call.1} parent=51 // pred_check
          %p661 = pneg %p219
        $region78: #{tpu_custom_call.1} parent=51 // pred_check_branch
          %663 = sbr.rel (%p661) target = $region80
        $region79: #{tpu_custom_call.1} parent=51 // pred_region
          %665 = vsyncadd %s657, 0
          %s666 = smul.addr %s28, 8
          %s667 = scalar_lea.hbm %s8, %s666
          %s669 = sshll.u32 %s660, 4
          %s670 = int_to_ptr.vmem [resolvable:$true] %s669
          %s671 = sshll.u32 %s667, 4
          %s672 = int_to_ptr.hbm [resolvable:$true] %s671
          %674 = dma.vmem_to_hbm [thread:$0]  %s670, 128, %s672, %s657
        $region80: #{tpu_custom_call.1} parent=51 // pred_fallthru
          _
      $region52: #{tpu_custom_call.1} parent=5 // pred_fallthru
        _
      %p675 = scmp.le.s32.totalorder 2, %s23
      // Predicated region
      $region81: #{tpu_custom_call.1} parent=5 // pred_check
        %p676 = pneg %p675
      $region82: #{tpu_custom_call.1} parent=5 // pred_check_branch
        %678 = sbr.rel (%p676) target = $region84
      $region83: #{tpu_custom_call.1} parent=5 // pred_region
        %s679 = ssub.s32 %s23, 2
        // Predicated region
        $region85: #{tpu_custom_call.1} parent=83 // pred_check
          %p680 = pneg %p225
        $region86: #{tpu_custom_call.1} parent=83 // pred_check_branch
          %682 = sbr.rel (%p680) target = $region88
        $region87: #{tpu_custom_call.1} parent=83 // pred_region
          %s683 = sand.u32 %s210, 1
          %s684 = scalar_lea.sflag [#allocation4], %s683
          %s685 = sand.u32 %s210, 1
          %s686 = smul.addr %s685, 8
          %s687 = scalar_lea.vmem [#allocation13], %s686
          %689 = dma.done %s684, 128
        $region88: #{tpu_custom_call.1} parent=83 // pred_fallthru
          _
      $region84: #{tpu_custom_call.1} parent=5 // pred_fallthru
        _
    $region6: #{tpu_custom_call.1} parent=1 // loop_footer
      %s27 = sadd.s32 1, %s23
    $region7: #{tpu_custom_call.1} parent=1 // loop_footer_branch
      %22 = sbr.rel target = $region3
    $region8: #{tpu_custom_call.1} parent=1 // loop_exit
      _
    %690 = vsyncpa [#allocation3], 1
    %s691 = scalar_lea.sflag [#allocation3], 1
    %692 = vsyncpa %s691, 1
    %693 = vsyncpa [#allocation6], 1
    %694 = vsyncpa [#allocation9], 1
    %695 = vsyncpa [#allocation12], 1
    %696 = vsyncpa [#allocation4], 1
    %s697 = scalar_lea.sflag [#allocation4], 1
    %698 = vsyncpa %s697, 1

</llo_original>
